<compile_context>
chip_gen: v6e
topology: v6e:2x2x1
jax: 0.10.0
libtpu: 0.0.40
codegen_flags: <defaults>
</compile_context>

<pallas_src>
import functools

import jax
import jax.numpy as jnp
from jax.experimental import pallas as pl
from jax.experimental.pallas import tpu as pltpu

HIDDEN = 256
LANE = 128
SUBLANE = 8


def _round_up(n, m):
    return ((n + m - 1) // m) * m


def qnetwork_kernel(x_ref, w1_ref, w2_ref, w3_ref, b_ref, o_ref, *, out_pad):
    # biases packed as [b1 (256) | b2 (256) | b3_pad (out_pad)] in one f32 buffer
    b1 = b_ref[:, 0:HIDDEN]
    b2 = b_ref[:, HIDDEN:2 * HIDDEN]
    b3 = b_ref[:, 2 * HIDDEN:2 * HIDDEN + out_pad]

    x = x_ref[...]

    # fc1 + ReLU : bf16 MXU, f32 accumulate, f32 epilogue
    h = jnp.dot(x.astype(jnp.bfloat16), w1_ref[...],
                preferred_element_type=jnp.float32)
    h = jnp.maximum(h + b1, 0.0)
    # dropout1 -> identity (eval mode)

    # fc2 + ReLU
    h = jnp.dot(h.astype(jnp.bfloat16), w2_ref[...],
                preferred_element_type=jnp.float32)
    h = jnp.maximum(h + b2, 0.0)
    # dropout2 -> identity (eval mode)

    # fc3 (lane-dense padded output, no activation)
    out = jnp.dot(h.astype(jnp.bfloat16), w3_ref[...],
                  preferred_element_type=jnp.float32) + b3
    o_ref[...] = out.astype(o_ref.dtype)


def qnetwork_forward(x, params, *, tb=2048, out_dtype=jnp.float32):
    """x: (B, input_size), f32 or bf16.  params: dict from init_params."""
    w1, w2, w3, biases = params["w1"], params["w2"], params["w3"], params["b"]
    out_size = params["out_size"]

    B, k = x.shape
    assert k == w1.shape[0], "x feature width must match w1 rows"
    out_pad = w3.shape[1]

    # Batch tile: multiple of 8 sublanes, as large as possible (mem/overhead
    # bound kernel), but clamped so the parallel grid has >=2 steps when B
    # allows it (keeps both v7x TensorCores busy; no effect on v5e/v6e).
    tb = max(SUBLANE, _round_up(int(tb), SUBLANE))
    tb = min(tb, _round_up(pl.cdiv(B, 2), SUBLANE))

    # Single pad (batch axis only) — feature axis is used at natural width.
    b_pad = _round_up(B, tb)
    if b_pad != B:
        x = jnp.pad(x, ((0, b_pad - B), (0, 0)))

    grid = (b_pad // tb,)
    kernel = functools.partial(qnetwork_kernel, out_pad=out_pad)

    itemsize = jnp.dtype(x.dtype).itemsize
    flops = 2 * b_pad * (k * HIDDEN + HIDDEN * HIDDEN + HIDDEN * out_pad)
    bytes_accessed = (
        b_pad * k * itemsize
        + w1.size * 2 + w2.size * 2 + w3.size * 2          # bf16 weights
        + biases.size * 4                                   # f32 biases
        + b_pad * out_pad * jnp.dtype(out_dtype).itemsize)  # output

    out = pl.pallas_call(
        kernel,
        out_shape=jax.ShapeDtypeStruct((b_pad, out_pad), out_dtype),
        grid=grid,
        in_specs=[
            pl.BlockSpec((tb, k), lambda i: (i, 0)),        # x: tiled over batch
            pl.BlockSpec(w1.shape, lambda i: (0, 0)),       # weights: VMEM-resident
            pl.BlockSpec(w2.shape, lambda i: (0, 0)),
            pl.BlockSpec(w3.shape, lambda i: (0, 0)),
            pl.BlockSpec(biases.shape, lambda i: (0, 0)),   # single fused bias DMA
        ],
        out_specs=pl.BlockSpec((tb, out_pad), lambda i: (i, 0)),
        compiler_params=pltpu.CompilerParams(
            dimension_semantics=("parallel",),              # split batch over TCs (v7x)
        ),
        cost_estimate=pl.CostEstimate(
            flops=flops, transcendentals=0, bytes_accessed=bytes_accessed),
    )(x, w1, w2, w3, biases)

    return out[:B, :out_size]


def init_params(key, input_size, output_size, hidden=HIDDEN):
    """PyTorch-default-like uniform init; weights stored pre-transposed (in,out).
    w1 keeps the natural input width (no feature over-pad); fc3 columns padded
    to a lane-dense multiple of 128."""
    ks = jax.random.split(key, 6)
    out_pad = _round_up(max(output_size, 1), LANE)

    def linear(kw, kb, fan_in, fan_out):
        bound = 1.0 / jnp.sqrt(fan_in)
        w = jax.random.uniform(kw, (fan_in, fan_out), jnp.float32, -bound, bound)
        b = jax.random.uniform(kb, (1, fan_out), jnp.float32, -bound, bound)
        return w, b

    w1, b1 = linear(ks[0], ks[1], input_size, hidden)
    w2, b2 = linear(ks[2], ks[3], hidden, hidden)
    w3, b3 = linear(ks[4], ks[5], hidden, output_size)

    w3p = jnp.zeros((hidden, out_pad), jnp.float32).at[:, :output_size].set(w3)
    b3p = jnp.zeros((1, out_pad), jnp.float32).at[:, :output_size].set(b3)

    return {
        "w1": w1.astype(jnp.bfloat16),
        "w2": w2.astype(jnp.bfloat16),
        "w3": w3p.astype(jnp.bfloat16),
        # all biases in one f32 buffer: [b1 | b2 | b3_pad]
        "b": jnp.concatenate([b1, b2, b3p], axis=1),
        "out_size": output_size,
    }


def reference_forward(x, params):
    """Pure-JAX reference with identical bf16-weight / f32-accumulate semantics."""
    b = params["b"]
    b1, b2, b3 = b[:, :HIDDEN], b[:, HIDDEN:2 * HIDDEN], b[:, 2 * HIDDEN:]
    h = jnp.dot(x.astype(jnp.bfloat16), params["w1"],
                preferred_element_type=jnp.float32)
    h = jnp.maximum(h + b1, 0.0)
    h = jnp.dot(h.astype(jnp.bfloat16), params["w2"],
                preferred_element_type=jnp.float32)
    h = jnp.maximum(h + b2, 0.0)
    out = jnp.dot(h.astype(jnp.bfloat16), params["w3"],
                  preferred_element_type=jnp.float32) + b3
    return out[:, :params["out_size"]]


if __name__ == "__main__":
    key = jax.random.PRNGKey(0)
    batch, input_size, output_size = 64, 32, 8

    kx, kp = jax.random.split(key)
    x = jax.random.normal(kx, (batch, input_size), jnp.float32)
    params = init_params(kp, input_size, output_size)

    # default tb clamps to cdiv(64,2)=32 -> 2 batch tiles: exercises the
    # pipelined, TC-parallel batch grid axis even at this small demo size
    out = qnetwork_forward(x, params)
    out = jax.block_until_ready(out)

    ref = reference_forward(x, params)
    assert out.shape == (batch, output_size)
    assert jnp.allclose(out, ref, atol=1e-2, rtol=1e-2), float(
        jnp.max(jnp.abs(out - ref)))
    print("KERNEL_OK")
</pallas_src>

<mosaic_0001>
module attributes {stable_mosaic.version = 11 : i64} {
  func.func @qnetwork_kernel(%arg0: i32, %arg1: memref<32x32xf32, #tpu.memory_space<vmem>>, %arg2: memref<32x256xbf16, #tpu.memory_space<vmem>>, %arg3: memref<256x256xbf16, #tpu.memory_space<vmem>>, %arg4: memref<256x128xbf16, #tpu.memory_space<vmem>>, %arg5: memref<1x640xf32, #tpu.memory_space<vmem>>, %arg6: memref<32x128xf32, #tpu.memory_space<vmem>>) attributes {dimension_semantics = [#tpu.dimension_semantics<parallel>], iteration_bounds = array<i64: 2>, scalar_prefetch = 0 : i64, scratch_operands = 0 : i64, tpu.core_type = #tpu.core_type<tc>, window_params = [{transform_indices = @transform_0, window_bounds = array<i64: 32, 32>}, {pipeline_mode = #tpu.pipeline_mode<synchronous>, transform_indices = @transform_1, window_bounds = array<i64: 32, 256>}, {pipeline_mode = #tpu.pipeline_mode<synchronous>, transform_indices = @transform_2, window_bounds = array<i64: 256, 256>}, {pipeline_mode = #tpu.pipeline_mode<synchronous>, transform_indices = @transform_3, window_bounds = array<i64: 256, 128>}, {pipeline_mode = #tpu.pipeline_mode<synchronous>, transform_indices = @transform_4, window_bounds = array<i64: 1, 640>}, {transform_indices = @transform_5, window_bounds = array<i64: 32, 128>}]} {
    %c0 = arith.constant 0 : index
    %c0_0 = arith.constant 0 : index
    %0 = vector.load %arg5[%c0, %c0_0] : memref<1x640xf32, #tpu.memory_space<vmem>>, vector<1x256xf32>
    %c0_1 = arith.constant 0 : index
    %c256 = arith.constant 256 : index
    %1 = vector.load %arg5[%c0_1, %c256] : memref<1x640xf32, #tpu.memory_space<vmem>>, vector<1x256xf32>
    %c0_2 = arith.constant 0 : index
    %c512 = arith.constant 512 : index
    %2 = vector.load %arg5[%c0_2, %c512] : memref<1x640xf32, #tpu.memory_space<vmem>>, vector<1x128xf32>
    %c0_3 = arith.constant 0 : index
    %c0_4 = arith.constant 0 : index
    %3 = vector.load %arg1[%c0_3, %c0_4] : memref<32x32xf32, #tpu.memory_space<vmem>>, vector<32x32xf32>
    %4 = arith.truncf %3 : vector<32x32xf32> to vector<32x32xbf16>
    %c0_5 = arith.constant 0 : index
    %c0_6 = arith.constant 0 : index
    %5 = vector.load %arg2[%c0_5, %c0_6] : memref<32x256xbf16, #tpu.memory_space<vmem>>, vector<32x256xbf16>
    %cst = arith.constant dense<0.000000e+00> : vector<32x256xf32>
    %6 = tpu.matmul %4, %5, %cst {dimension_numbers = #tpu.dot_dimension_numbers<[1], [0], [0], [1], [0, 0, 1, 1], [], []>} : vector<32x32xbf16>, vector<32x256xbf16>, vector<32x256xf32> -> vector<32x256xf32>
    %7 = vector.broadcast %0 : vector<1x256xf32> to vector<32x256xf32>
    %8 = arith.addf %6, %7 : vector<32x256xf32>
    %cst_7 = arith.constant 0.000000e+00 : f32
    %9 = vector.broadcast %cst_7 : f32 to vector<32x256xf32>
    %10 = arith.maximumf %8, %9 : vector<32x256xf32>
    %11 = arith.truncf %10 : vector<32x256xf32> to vector<32x256xbf16>
    %c0_8 = arith.constant 0 : index
    %c0_9 = arith.constant 0 : index
    %12 = vector.load %arg3[%c0_8, %c0_9] : memref<256x256xbf16, #tpu.memory_space<vmem>>, vector<256x256xbf16>
    %cst_10 = arith.constant dense<0.000000e+00> : vector<32x256xf32>
    %13 = tpu.matmul %11, %12, %cst_10 {dimension_numbers = #tpu.dot_dimension_numbers<[1], [0], [0], [1], [0, 0, 1, 1], [], []>} : vector<32x256xbf16>, vector<256x256xbf16>, vector<32x256xf32> -> vector<32x256xf32>
    %14 = vector.broadcast %1 : vector<1x256xf32> to vector<32x256xf32>
    %15 = arith.addf %13, %14 : vector<32x256xf32>
    %cst_11 = arith.constant 0.000000e+00 : f32
    %16 = vector.broadcast %cst_11 : f32 to vector<32x256xf32>
    %17 = arith.maximumf %15, %16 : vector<32x256xf32>
    %18 = arith.truncf %17 : vector<32x256xf32> to vector<32x256xbf16>
    %c0_12 = arith.constant 0 : index
    %c0_13 = arith.constant 0 : index
    %19 = vector.load %arg4[%c0_12, %c0_13] : memref<256x128xbf16, #tpu.memory_space<vmem>>, vector<256x128xbf16>
    %cst_14 = arith.constant dense<0.000000e+00> : vector<32x128xf32>
    %20 = tpu.matmul %18, %19, %cst_14 {dimension_numbers = #tpu.dot_dimension_numbers<[1], [0], [0], [1], [0, 0, 1, 1], [], []>} : vector<32x256xbf16>, vector<256x128xbf16>, vector<32x128xf32> -> vector<32x128xf32>
    %21 = vector.broadcast %2 : vector<1x128xf32> to vector<32x128xf32>
    %22 = arith.addf %20, %21 : vector<32x128xf32>
    %c0_15 = arith.constant 0 : index
    %c0_16 = arith.constant 0 : index
    %23 = vector.load %arg6[%c0_15, %c0_16] : memref<32x128xf32, #tpu.memory_space<vmem>>, vector<32x128xf32>
    tpu.vector_store %arg6[%c0_15, %c0_16], %22 {strides = array<i32>} : memref<32x128xf32, #tpu.memory_space<vmem>>, vector<32x128xf32>,
    return
  }
  func.func @transform_0(%arg0: i32) -> (i32, i32) {
    %c0_i32 = arith.constant 0 : i32
    %c0_i32_0 = arith.constant 0 : i32
    return %arg0, %c0_i32 : i32, i32
  }
  func.func @transform_1(%arg0: i32) -> (i32, i32) {
    %c0_i32 = arith.constant 0 : i32
    %c0_i32_0 = arith.constant 0 : i32
    %c0_i32_1 = arith.constant 0 : i32
    return %c0_i32, %c0_i32_0 : i32, i32
  }
  func.func @transform_2(%arg0: i32) -> (i32, i32) {
    %c0_i32 = arith.constant 0 : i32
    %c0_i32_0 = arith.constant 0 : i32
    %c0_i32_1 = arith.constant 0 : i32
    return %c0_i32, %c0_i32_0 : i32, i32
  }
  func.func @transform_3(%arg0: i32) -> (i32, i32) {
    %c0_i32 = arith.constant 0 : i32
    %c0_i32_0 = arith.constant 0 : i32
    %c0_i32_1 = arith.constant 0 : i32
    return %c0_i32, %c0_i32_0 : i32, i32
  }
  func.func @transform_4(%arg0: i32) -> (i32, i32) {
    %c0_i32 = arith.constant 0 : i32
    %c0_i32_0 = arith.constant 0 : i32
    %c0_i32_1 = arith.constant 0 : i32
    return %c0_i32, %c0_i32_0 : i32, i32
  }
  func.func @transform_5(%arg0: i32) -> (i32, i32) {
    %c0_i32 = arith.constant 0 : i32
    %c0_i32_0 = arith.constant 0 : i32
    return %arg0, %c0_i32 : i32, i32
  }
}

</mosaic_0001>

<llo_original>
// kernel: tpu_custom_call.1
$region0: #{tpu_custom_call.1}
  #allocation0 [shape = 'u32[]', space=smem, size = 0x4, offset = 0x4, fixed_abs, tag = 'smem constant byte address 0x4 - core index']
  #allocation1 [shape = 'u32[144,128]{1,0:T(1,128)}', space=vmem, size = 0x12000, scoped, tag = 'internal scratch']
  %s0 = inlined_call_operand.vmem [shape: f32[64,32], index: 0, kind: input, shape index: {}]
  %s1 = inlined_call_operand.vmem [shape: bf16[32,256], index: 1, kind: input, shape index: {}]
  %s2 = inlined_call_operand.hbm [shape: bf16[256,256], index: 2, kind: input, shape index: {}]
  %s3 = inlined_call_operand.hbm [shape: bf16[256,128], index: 3, kind: input, shape index: {}]
  %s4 = inlined_call_operand.vmem [shape: f32[1,640], index: 4, kind: input, shape index: {}]
  %s5 = inlined_call_operand.hbm [shape: f32[64,128], index: 5, kind: output, shape index: {}]
  %s6 = sld [smem:[#allocation0]]
  $region61: #{tpu_custom_call.1} parent=0
    _
  %s8 = ssub.s32 1, %s6
  %s9 = scalar_select 0, %s8, %s6
  $region1: #{tpu_custom_call.1} parent=0
    #allocation2 [shape = 'u8[131072]{0}', space=vmem, size = 0x20000, scoped, tag = 'input window, operand 2, single buffered']
    #allocation3 [shape = 's32[2]{0}', space=sflag, size = 0x8, scoped, tag = 'scoped memory for tpu_custom_call.1']
    #allocation4 [shape = 's32[2]{0}', space=sflag, size = 0x8, scoped, tag = 'scoped memory for tpu_custom_call.1']
    #allocation5 [shape = 'u8[65536]{0}', space=vmem, size = 0x10000, scoped, tag = 'input window, operand 3, single buffered']
    #allocation6 [shape = 's32[1]{0}', space=sflag, size = 0x4, scoped, tag = 'scoped memory for tpu_custom_call.1']
    #allocation7 [shape = 'u8[32768]{0}', space=vmem, size = 0x8000, scoped, tag = 'output window, operand 0']
    %10 = vsyncpa [#allocation3], 0
    %11 = vsyncpa [#allocation6], 0
    %12 = vsyncpa [#allocation4], 0
    %s13 = scalar_lea.sflag [#allocation4], 1
    %14 = vsyncpa %s13, 0
    loop: start=0, step=1, limit=4
    $region2: #{tpu_custom_call.1} parent=1 // loop_pre_header
      _
    $region3: #{tpu_custom_call.1} parent=1 // loop_header
      %s16 = sphi 0, %s20
      %p17 = scmp.ge.s32.totalorder %s16, 4
      %s26 = sphi 0, %s28
      %s29 = sphi 0, %s26
      %s30 = sphi 0, %s29
      %s46 = sphi 0, %s30
      %s50 = sphi 0, %s50
      %s52 = sphi 0, %s50
      %s53 = sphi 0, %s52
      %s67 = sphi 0, %s53
      %s71 = sphi 0, %s71
      %s73 = sphi 0, %s71
      %s74 = sphi 0, %s73
      %s88 = sphi 0, %s74
      %s92 = sphi 0, %s92
      %s94 = sphi 0, %s92
      %s95 = sphi 0, %s94
      %s109 = sphi 0, %s95
      %s113 = sphi 0, %s113
      %s115 = sphi 0, %s113
      %s116 = sphi 0, %s115
      %s130 = sphi 0, %s116
      %s136 = sphi 0, %s138
      %s139 = sphi 0, %s136
      %s140 = sphi 0, %s139
      %s156 = sphi 0, %s140
    $region4: #{tpu_custom_call.1} parent=1 // loop_header_branch
      %19 = sbr.rel (%p17) target = $region8
    $region5: #{tpu_custom_call.1} parent=1 // loop_body
      %s21 = ssub.s32 %s16, 1
      %s22 = ssub.s32 %s16, 2
      %s23 = sadd.s32 %s16, 1
      %s24 = ssub.s32 %s16, %s23
      %p25 = scmp.eq.s32.totalorder %s24, 0
      %s27 = sadd.s32 %s26, 1
      %s28 = scalar_select %p25, %s26, %s27
      %p31 = pneg %p25
      %p32 = scmp.eq.s32.totalorder %s16, 1
      %p33 = por %p31, %p32
      %p34 = scmp.ne.s32.totalorder %s26, %s29
      %p35 = scmp.eq.s32.totalorder %s16, 0
      %p36 = por %p34, %p35
      %p37 = scmp.ne.s32.totalorder %s26, %s29
      %p38 = scmp.eq.s32.totalorder %s21, 1
      %p39 = por %p37, %p38
      %p40 = scmp.ne.s32.totalorder %s29, %s30
      %p41 = scmp.eq.s32.totalorder %s21, 0
      %p42 = por %p40, %p41
      %p43 = scmp.ne.s32.totalorder %s29, %s30
      %p44 = scmp.eq.s32.totalorder %s22, 1
      %p45 = por %p43, %p44
      %p47 = scmp.ne.s32.totalorder %s30, %s46
      %p48 = scmp.eq.s32.totalorder %s22, 0
      %p49 = por %p47, %p48
      %s51 = sadd.s32 %s50, 1
      %p54 = scmp.eq.s32.totalorder %s16, 1
      %p55 = scmp.ne.s32.totalorder %s50, %s52
      %p56 = scmp.eq.s32.totalorder %s16, 0
      %p57 = por %p55, %p56
      %p58 = scmp.ne.s32.totalorder %s50, %s52
      %p59 = scmp.eq.s32.totalorder %s21, 1
      %p60 = por %p58, %p59
      %p61 = scmp.ne.s32.totalorder %s52, %s53
      %p62 = scmp.eq.s32.totalorder %s21, 0
      %p63 = por %p61, %p62
      %p64 = scmp.ne.s32.totalorder %s52, %s53
      %p65 = scmp.eq.s32.totalorder %s22, 1
      %p66 = por %p64, %p65
      %p68 = scmp.ne.s32.totalorder %s53, %s67
      %p69 = scmp.eq.s32.totalorder %s22, 0
      %p70 = por %p68, %p69
      %s72 = sadd.s32 %s71, 1
      %p75 = scmp.eq.s32.totalorder %s16, 1
      %p76 = scmp.ne.s32.totalorder %s71, %s73
      %p77 = scmp.eq.s32.totalorder %s16, 0
      %p78 = por %p76, %p77
      %p79 = scmp.ne.s32.totalorder %s71, %s73
      %p80 = scmp.eq.s32.totalorder %s21, 1
      %p81 = por %p79, %p80
      %p82 = scmp.ne.s32.totalorder %s73, %s74
      %p83 = scmp.eq.s32.totalorder %s21, 0
      %p84 = por %p82, %p83
      %p85 = scmp.ne.s32.totalorder %s73, %s74
      %p86 = scmp.eq.s32.totalorder %s22, 1
      %p87 = por %p85, %p86
      %p89 = scmp.ne.s32.totalorder %s74, %s88
      %p90 = scmp.eq.s32.totalorder %s22, 0
      %p91 = por %p89, %p90
      %s93 = sadd.s32 %s92, 1
      %p96 = scmp.eq.s32.totalorder %s16, 1
      %p97 = scmp.ne.s32.totalorder %s92, %s94
      %p98 = scmp.eq.s32.totalorder %s16, 0
      %p99 = por %p97, %p98
      %p100 = scmp.ne.s32.totalorder %s92, %s94
      %p101 = scmp.eq.s32.totalorder %s21, 1
      %p102 = por %p100, %p101
      %p103 = scmp.ne.s32.totalorder %s94, %s95
      %p104 = scmp.eq.s32.totalorder %s21, 0
      %p105 = por %p103, %p104
      %p106 = scmp.ne.s32.totalorder %s94, %s95
      %p107 = scmp.eq.s32.totalorder %s22, 1
      %p108 = por %p106, %p107
      %p110 = scmp.ne.s32.totalorder %s95, %s109
      %p111 = scmp.eq.s32.totalorder %s22, 0
      %p112 = por %p110, %p111
      %s114 = sadd.s32 %s113, 1
      %p117 = scmp.eq.s32.totalorder %s16, 1
      %p118 = scmp.ne.s32.totalorder %s113, %s115
      %p119 = scmp.eq.s32.totalorder %s16, 0
      %p120 = por %p118, %p119
      %p121 = scmp.ne.s32.totalorder %s113, %s115
      %p122 = scmp.eq.s32.totalorder %s21, 1
      %p123 = por %p121, %p122
      %p124 = scmp.ne.s32.totalorder %s115, %s116
      %p125 = scmp.eq.s32.totalorder %s21, 0
      %p126 = por %p124, %p125
      %p127 = scmp.ne.s32.totalorder %s115, %s116
      %p128 = scmp.eq.s32.totalorder %s22, 1
      %p129 = por %p127, %p128
      %p131 = scmp.ne.s32.totalorder %s116, %s130
      %p132 = scmp.eq.s32.totalorder %s22, 0
      %p133 = por %p131, %p132
      %s134 = ssub.s32 %s16, %s23
      %p135 = scmp.eq.s32.totalorder %s134, 0
      %s137 = sadd.s32 %s136, 1
      %s138 = scalar_select %p135, %s136, %s137
      %p141 = pneg %p135
      %p142 = scmp.eq.s32.totalorder %s16, 1
      %p143 = por %p141, %p142
      %p144 = scmp.ne.s32.totalorder %s136, %s139
      %p145 = scmp.eq.s32.totalorder %s16, 0
      %p146 = por %p144, %p145
      %p147 = scmp.ne.s32.totalorder %s136, %s139
      %p148 = scmp.eq.s32.totalorder %s21, 1
      %p149 = por %p147, %p148
      %p150 = scmp.ne.s32.totalorder %s139, %s140
      %p151 = scmp.eq.s32.totalorder %s21, 0
      %p152 = por %p150, %p151
      %p153 = scmp.ne.s32.totalorder %s139, %s140
      %p154 = scmp.eq.s32.totalorder %s22, 1
      %p155 = por %p153, %p154
      %p157 = scmp.ne.s32.totalorder %s140, %s156
      %p158 = scmp.eq.s32.totalorder %s22, 0
      %p159 = por %p157, %p158
      %p160 = scmp.le.s32.totalorder 1, %s16
      %p161 = scmp.lt.s32.totalorder %s16, 3
      %p162 = pnand %p160, %p161
      %p163 = pneg %p162
      // Predicated region
      $region9: #{tpu_custom_call.1} parent=5 // pred_check
        _
      $region10: #{tpu_custom_call.1} parent=5 // pred_check_branch
        %165 = sbr.rel (%p162) target = $region12
      $region11: #{tpu_custom_call.1} parent=5 // pred_region
        %s166 = ssub.s32 %s16, 1
        // Predicated region
        $region13: #{tpu_custom_call.1} parent=11 // pred_check
          %p167 = pneg %p63
        $region14: #{tpu_custom_call.1} parent=11 // pred_check_branch
          %169 = sbr.rel (%p167) target = $region16
        $region15: #{tpu_custom_call.1} parent=11 // pred_region
          _
        $region16: #{tpu_custom_call.1} parent=11 // pred_fallthru
          _
        // Predicated region
        $region17: #{tpu_custom_call.1} parent=11 // pred_check
          %p170 = pneg %p84
        $region18: #{tpu_custom_call.1} parent=11 // pred_check_branch
          %172 = sbr.rel (%p170) target = $region20
        $region19: #{tpu_custom_call.1} parent=11 // pred_region
          %s174 = ssub.s32 4096, 4096
          %175 = vsyncadd [#allocation3], %s174
          %s176 = sshll.u32 [#allocation2], 4
          %s177 = int_to_ptr.vmem [resolvable:$true] %s176
          %182 = dma.hbm_to_vmem [thread:$0]  %s2, 4096, %s177, [#allocation3], 128, 128, 8
        $region20: #{tpu_custom_call.1} parent=11 // pred_fallthru
          _
        // Predicated region
        $region21: #{tpu_custom_call.1} parent=11 // pred_check
          %p183 = pneg %p105
        $region22: #{tpu_custom_call.1} parent=11 // pred_check_branch
          %185 = sbr.rel (%p183) target = $region24
        $region23: #{tpu_custom_call.1} parent=11 // pred_region
          %s187 = ssub.s32 2048, 2048
          %188 = vsyncadd [#allocation6], %s187
          %s189 = sshll.u32 [#allocation5], 4
          %s190 = int_to_ptr.vmem [resolvable:$true] %s189
          %195 = dma.hbm_to_vmem [thread:$0]  %s3, 2048, %s190, [#allocation6], 64, 64, 4
        $region24: #{tpu_custom_call.1} parent=11 // pred_fallthru
          _
        // Predicated region
        $region25: #{tpu_custom_call.1} parent=11 // pred_check
          %p196 = pneg %p126
        $region26: #{tpu_custom_call.1} parent=11 // pred_check_branch
          %198 = sbr.rel (%p196) target = $region28
        $region27: #{tpu_custom_call.1} parent=11 // pred_region
          _
        $region28: #{tpu_custom_call.1} parent=11 // pred_fallthru
          _
      $region12: #{tpu_custom_call.1} parent=5 // pred_fallthru
        _
      %p199 = scmp.lt.s32.totalorder %s16, 2
      // Predicated region
      $region29: #{tpu_custom_call.1} parent=5 // pred_check
        %p200 = pneg %p199
      $region30: #{tpu_custom_call.1} parent=5 // pred_check_branch
        %202 = sbr.rel (%p200) target = $region32
      $region31: #{tpu_custom_call.1} parent=5 // pred_region
        // Predicated region
        $region33: #{tpu_custom_call.1} parent=31 // pred_check
          %p203 = pneg %p36
        $region34: #{tpu_custom_call.1} parent=31 // pred_check_branch
          %205 = sbr.rel (%p203) target = $region36
        $region35: #{tpu_custom_call.1} parent=31 // pred_region
          %s206 = smul.u32 4, %s16
          %p207 = scmp.lt.s32.totalorder %s206, 7
          %s208 = scalar_select %p207, %s206, 7
          %s209 = smul.addr %s208, 8
          %s210 = scalar_lea.vmem %s0, %s209
          %s211 = smul.u32 4, %s16
        $region36: #{tpu_custom_call.1} parent=31 // pred_fallthru
          _
      $region32: #{tpu_custom_call.1} parent=5 // pred_fallthru
        _
      %p212 = scmp.le.s32.totalorder 1, %s16
      %p213 = scmp.lt.s32.totalorder %s16, 3
      %p214 = pnand %p212, %p213
      %p215 = pneg %p214
      // Predicated region
      $region37: #{tpu_custom_call.1} parent=5 // pred_check
        _
      $region38: #{tpu_custom_call.1} parent=5 // pred_check_branch
        %217 = sbr.rel (%p214) target = $region40
      $region39: #{tpu_custom_call.1} parent=5 // pred_region
        %s218 = ssub.s32 %s16, 1
        // Predicated region
        $region41: #{tpu_custom_call.1} parent=39 // pred_check
          %p219 = pneg %p84
        $region42: #{tpu_custom_call.1} parent=39 // pred_check_branch
          %221 = sbr.rel (%p219) target = $region44
        $region43: #{tpu_custom_call.1} parent=39 // pred_region
          %222 = dma.done [#allocation3], 4096
        $region44: #{tpu_custom_call.1} parent=39 // pred_fallthru
          _
        // Predicated region
        $region45: #{tpu_custom_call.1} parent=39 // pred_check
          %p223 = pneg %p105
        $region46: #{tpu_custom_call.1} parent=39 // pred_check_branch
          %225 = sbr.rel (%p223) target = $region48
        $region47: #{tpu_custom_call.1} parent=39 // pred_region
          %226 = dma.done [#allocation6], 2048
        $region48: #{tpu_custom_call.1} parent=39 // pred_fallthru
          _
        %s227 = smul.u32 4, %s21
        %p228 = scmp.lt.s32.totalorder %s227, 7
        %s229 = scalar_select %p228, %s227, 7
        %s230 = smul.addr %s229, 8
        %s231 = scalar_lea.vmem %s0, %s230
        %p232 = pneg %p42
        %p233 = pneg %p39
        %p234 = pneg %p63
        %p235 = pneg %p60
        %p236 = pneg %p84
        %p237 = pneg %p81
        %p238 = pneg %p105
        %p239 = pneg %p102
        %p240 = pneg %p126
        %p241 = pneg %p123
        %p242 = pneg %p152
        %p243 = pneg %p149
        %s244 = sand.u32 %s139, 1
        %s245 = scalar_lea.sflag [#allocation4], %s244
        %s246 = sand.u32 %s139, 1
        %s247 = smul.addr %s246, 32
        %s248 = scalar_lea.vmem [#allocation7], %s247
        %s249 = smul.u32 4, %s21
        %p250 = scmp.lt.s32.totalorder %s249, 7
        %s251 = scalar_select %p250, %s249, 7
        %s252 = smul.addr %s251, 8
        %s253 = scalar_lea.vmem %s0, %s252
        %s254 = smul.u32 4, %s21
        %s255 = smul.u32 4, %s21
        %v257 = vld [vmem:[%s4] sm:$0x3]
        %v258 = vld [vmem:[%s4 + $0x2] sm:$0x3]
        %v259 = vld [vmem:[%s4 + $0x4] sm:$0x1]
        %v260 = vld [vmem:[%s253] sm:$0xff]
        %v261 = vld [vmem:[%s253 + $0x8] sm:$0xff]
        %v262 = vld [vmem:[%s253 + $0x10] sm:$0xff]
        %v263 = vld [vmem:[%s253 + $0x18] sm:$0xff]
        %v264 = vpack.c.bf16 %v261, %v260
        %v265 = vpack.c.bf16 %v263, %v262
        %v266 = vld [vmem:[%s1] sm:$0xff]
        %v267 = vld [vmem:[%s1 + $0x8] sm:$0xff]
        %v268 = vld [vmem:[%s1 + $0x10] sm:$0xff]
        %v269 = vld [vmem:[%s1 + $0x18] sm:$0xff]
        %v271 = vlaneseq
        %v272 = vshrl.u32 %v271, 7
        %v273 = vsub.s32 0, %v272
        %v274 = vrot.slane %v257, %v273
        %v275 = vlaneseq
        %v276 = vshrl.u32 %v275, 7
        %v277 = vsub.s32 1, %v276
        %v278 = vrot.slane %v257, %v277
        %v285 = vunpack.c.l.b16 %v266
        %v286 = vunpack.c.h.b16 %v266
        %v287 = vunpack.c.l.b16 %v267
        %v288 = vunpack.c.h.b16 %v267
        %v289 = vunpack.c.l.b16 %v268
        %v290 = vunpack.c.h.b16 %v268
        %v291 = vunpack.c.l.b16 %v269
        %v292 = vunpack.c.h.b16 %v269
        %v293 = vpack.c.b16 %v287, %v285
        %v294 = vpack.c.b16 %v288, %v286
        %v295 = vpack.c.b16 %v291, %v289
        %v296 = vpack.c.b16 %v292, %v290
        %vm301 = vcmask 261120
        %v303 = vsel %vm301, %v264, 0
        %v306 = vsel %vm301, %v265, 0
        %308 = vmatprep.subr.bf16.mxu0 0
        %309 = vmatpush1.bf16.msra.mxu0 0
        %310 = vmatprep.subr.bf16.mxu0 0
        %311 = vmatpush1.bf16.msra.mxu0 0
        %312 = vmatprep.subr.bf16.mxu0 0
        %313 = vmatpush1.bf16.msra.mxu0 0
        %314 = vmatprep.subr.bf16.mxu0 0
        %315 = vmatpush1.bf16.msra.mxu0 0
        %316 = vmatprep.subr.bf16.mxu0 0
        %317 = vmatpush1.bf16.msra.mxu0 0
        %318 = vmatprep.subr.bf16.mxu0 0
        %319 = vmatpush1.bf16.msra.mxu0 0
        %320 = vmatprep.subr.bf16.mxu0 %v296
        %321 = vmatpush1.bf16.msra.mxu0 %v295
        %322 = vmatprep.subr.bf16.mxu0 %v294
        %323 = vmatpush1.bf16.msra.mxu0 %v293
        %324 = vmatprep.subr.bf16.mxu0 0
        %325 = vmatpush2.bf16.msra.mxu0 0
        %326 = vmatprep.subr.bf16.mxu0 0
        %327 = vmatpush2.bf16.msra.mxu0 0
        %328 = vmatprep.subr.bf16.mxu0 0
        %329 = vmatpush2.bf16.msra.mxu0 0
        %330 = vmatprep.subr.bf16.mxu0 0
        %331 = vmatpush2.bf16.msra.mxu0 0
        %332 = vmatprep.subr.bf16.mxu0 0
        %333 = vmatpush2.bf16.msra.mxu0 0
        %334 = vmatprep.subr.bf16.mxu0 0
        %335 = vmatpush2.bf16.msra.mxu0 0
        %336 = vmatprep.subr.bf16.mxu0 0
        %337 = vmatpush2.bf16.msra.mxu0 0
        %338 = vmatprep.subr.bf16.mxu0 0
        %339 = vmatpush2.bf16.msra.mxu0 0
        %340 = vmatprep.mubr.bf16.mxu0 0
        %341 = vmatmul.mubr.bf16.gmra.mxu0 %v303
        %v342 = vpop.f32.mrf.mxu0
        %v343 = vadd.f32 %v274, %v342
        %v344 = vpop.f32.mrf.mxu0
        %v345 = vadd.f32 %v278, %v344
        %v346 = vpop.f32.mrf.mxu0
        %v347 = vadd.f32 %v274, %v346
        %v348 = vpop.f32.mrf.mxu0
        %v349 = vadd.f32 %v278, %v348
        %350 = vmatprep.mubr.bf16.mxu0 0
        %351 = vmatmul.mubr.bf16.gmra.mxu0 %v306
        %v352 = vpop.f32.mrf.mxu0
        %v353 = vadd.f32 %v274, %v352
        %v354 = vpop.f32.mrf.mxu0
        %v355 = vadd.f32 %v278, %v354
        %v356 = vpop.f32.mrf.mxu0
        %v357 = vadd.f32 %v274, %v356
        %v358 = vpop.f32.mrf.mxu0
        %v359 = vadd.f32 %v278, %v358
        %360 = vdwg.mxu0
        %v361 = vmax.f32 %v343, 0.0
        %v362 = vmax.f32 %v345, 0.0
        %v363 = vmax.f32 %v347, 0.0
        %v364 = vmax.f32 %v349, 0.0
        %v365 = vmax.f32 %v353, 0.0
        %v366 = vmax.f32 %v355, 0.0
        %v367 = vmax.f32 %v357, 0.0
        %v368 = vmax.f32 %v359, 0.0
        %v369 = vpack.c.bf16 %v363, %v361
        %v370 = vpack.c.bf16 %v364, %v362
        %v371 = vpack.c.bf16 %v367, %v365
        %v372 = vpack.c.bf16 %v368, %v366
        %v373 = vld [vmem:[#allocation2] sm:$0xff]
        %v374 = vld [vmem:[#allocation2 + $0x8] sm:$0xff]
        %v375 = vld [vmem:[#allocation2 + $0x10] sm:$0xff]
        %v376 = vld [vmem:[#allocation2 + $0x18] sm:$0xff]
        %v377 = vld [vmem:[#allocation2 + $0x20] sm:$0xff]
        %v378 = vld [vmem:[#allocation2 + $0x28] sm:$0xff]
        %v379 = vld [vmem:[#allocation2 + $0x30] sm:$0xff]
        %v380 = vld [vmem:[#allocation2 + $0x38] sm:$0xff]
        %v381 = vld [vmem:[#allocation2 + $0x40] sm:$0xff]
        %v382 = vld [vmem:[#allocation2 + $0x48] sm:$0xff]
        %v383 = vld [vmem:[#allocation2 + $0x50] sm:$0xff]
        %v384 = vld [vmem:[#allocation2 + $0x58] sm:$0xff]
        %v385 = vld [vmem:[#allocation2 + $0x60] sm:$0xff]
        %v386 = vld [vmem:[#allocation2 + $0x68] sm:$0xff]
        %v387 = vld [vmem:[#allocation2 + $0x70] sm:$0xff]
        %v388 = vld [vmem:[#allocation2 + $0x78] sm:$0xff]
        %v389 = vld [vmem:[#allocation2 + $0x80] sm:$0xff]
        %v390 = vld [vmem:[#allocation2 + $0x88] sm:$0xff]
        %v391 = vld [vmem:[#allocation2 + $0x90] sm:$0xff]
        %v392 = vld [vmem:[#allocation2 + $0x98] sm:$0xff]
        %v393 = vld [vmem:[#allocation2 + $0xa0] sm:$0xff]
        %v394 = vld [vmem:[#allocation2 + $0xa8] sm:$0xff]
        %v395 = vld [vmem:[#allocation2 + $0xb0] sm:$0xff]
        %v396 = vld [vmem:[#allocation2 + $0xb8] sm:$0xff]
        %v397 = vld [vmem:[#allocation2 + $0xc0] sm:$0xff]
        %v398 = vld [vmem:[#allocation2 + $0xc8] sm:$0xff]
        %v399 = vld [vmem:[#allocation2 + $0xd0] sm:$0xff]
        %v400 = vld [vmem:[#allocation2 + $0xd8] sm:$0xff]
        %v401 = vld [vmem:[#allocation2 + $0xe0] sm:$0xff]
        %v402 = vld [vmem:[#allocation2 + $0xe8] sm:$0xff]
        %v403 = vld [vmem:[#allocation2 + $0xf0] sm:$0xff]
        %v404 = vld [vmem:[#allocation2 + $0xf8] sm:$0xff]
        %v406 = vlaneseq
        %v407 = vshrl.u32 %v406, 7
        %v408 = vsub.s32 0, %v407
        %v409 = vrot.slane %v258, %v408
        %v410 = vlaneseq
        %v411 = vshrl.u32 %v410, 7
        %v412 = vsub.s32 1, %v411
        %v413 = vrot.slane %v258, %v412
        %v448 = vunpack.c.l.b16 %v373
        %v449 = vunpack.c.h.b16 %v373
        %v450 = vunpack.c.l.b16 %v374
        %v451 = vunpack.c.h.b16 %v374
        %v452 = vunpack.c.l.b16 %v375
        %v453 = vunpack.c.h.b16 %v375
        %v454 = vunpack.c.l.b16 %v376
        %v455 = vunpack.c.h.b16 %v376
        %v456 = vunpack.c.l.b16 %v377
        %v457 = vunpack.c.h.b16 %v377
        %v458 = vunpack.c.l.b16 %v378
        %v459 = vunpack.c.h.b16 %v378
        %v460 = vunpack.c.l.b16 %v379
        %v461 = vunpack.c.h.b16 %v379
        %v462 = vunpack.c.l.b16 %v380
        %v463 = vunpack.c.h.b16 %v380
        %v464 = vunpack.c.l.b16 %v381
        %v465 = vunpack.c.h.b16 %v381
        %v466 = vunpack.c.l.b16 %v382
        %v467 = vunpack.c.h.b16 %v382
        %v468 = vunpack.c.l.b16 %v383
        %v469 = vunpack.c.h.b16 %v383
        %v470 = vunpack.c.l.b16 %v384
        %v471 = vunpack.c.h.b16 %v384
        %v472 = vunpack.c.l.b16 %v385
        %v473 = vunpack.c.h.b16 %v385
        %v474 = vunpack.c.l.b16 %v386
        %v475 = vunpack.c.h.b16 %v386
        %v476 = vunpack.c.l.b16 %v387
        %v477 = vunpack.c.h.b16 %v387
        %v478 = vunpack.c.l.b16 %v388
        %v479 = vunpack.c.h.b16 %v388
        %v480 = vunpack.c.l.b16 %v389
        %v481 = vunpack.c.h.b16 %v389
        %v482 = vunpack.c.l.b16 %v390
        %v483 = vunpack.c.h.b16 %v390
        %v484 = vunpack.c.l.b16 %v391
        %v485 = vunpack.c.h.b16 %v391
        %v486 = vunpack.c.l.b16 %v392
        %v487 = vunpack.c.h.b16 %v392
        %v488 = vunpack.c.l.b16 %v393
        %v489 = vunpack.c.h.b16 %v393
        %v490 = vunpack.c.l.b16 %v394
        %v491 = vunpack.c.h.b16 %v394
        %v492 = vunpack.c.l.b16 %v395
        %v493 = vunpack.c.h.b16 %v395
        %v494 = vunpack.c.l.b16 %v396
        %v495 = vunpack.c.h.b16 %v396
        %v496 = vunpack.c.l.b16 %v397
        %v497 = vunpack.c.h.b16 %v397
        %v498 = vunpack.c.l.b16 %v398
        %v499 = vunpack.c.h.b16 %v398
        %v500 = vunpack.c.l.b16 %v399
        %v501 = vunpack.c.h.b16 %v399
        %v502 = vunpack.c.l.b16 %v400
        %v503 = vunpack.c.h.b16 %v400
        %v504 = vunpack.c.l.b16 %v401
        %v505 = vunpack.c.h.b16 %v401
        %v506 = vunpack.c.l.b16 %v402
        %v507 = vunpack.c.h.b16 %v402
        %v508 = vunpack.c.l.b16 %v403
        %v509 = vunpack.c.h.b16 %v403
        %v510 = vunpack.c.l.b16 %v404
        %v511 = vunpack.c.h.b16 %v404
        %v512 = vpack.c.b16 %v450, %v448
        %v513 = vpack.c.b16 %v451, %v449
        %v514 = vpack.c.b16 %v454, %v452
        %v515 = vpack.c.b16 %v455, %v453
        %v516 = vpack.c.b16 %v458, %v456
        %v517 = vpack.c.b16 %v459, %v457
        %v518 = vpack.c.b16 %v462, %v460
        %v519 = vpack.c.b16 %v463, %v461
        %v520 = vpack.c.b16 %v466, %v464
        %v521 = vpack.c.b16 %v467, %v465
        %v522 = vpack.c.b16 %v470, %v468
        %v523 = vpack.c.b16 %v471, %v469
        %v524 = vpack.c.b16 %v474, %v472
        %v525 = vpack.c.b16 %v475, %v473
        %v526 = vpack.c.b16 %v478, %v476
        %v527 = vpack.c.b16 %v479, %v477
        %v528 = vpack.c.b16 %v482, %v480
        %v529 = vpack.c.b16 %v483, %v481
        %v530 = vpack.c.b16 %v486, %v484
        %v531 = vpack.c.b16 %v487, %v485
        %v532 = vpack.c.b16 %v490, %v488
        %v533 = vpack.c.b16 %v491, %v489
        %v534 = vpack.c.b16 %v494, %v492
        %v535 = vpack.c.b16 %v495, %v493
        %v536 = vpack.c.b16 %v498, %v496
        %v537 = vpack.c.b16 %v499, %v497
        %v538 = vpack.c.b16 %v502, %v500
        %v539 = vpack.c.b16 %v503, %v501
        %v540 = vpack.c.b16 %v506, %v504
        %v541 = vpack.c.b16 %v507, %v505
        %v542 = vpack.c.b16 %v510, %v508
        %v543 = vpack.c.b16 %v511, %v509
        %576 = vmatprep.subr.bf16.mxu0 %v527
        %577 = vmatpush1.bf16.msra.mxu0 %v526
        %578 = vmatprep.subr.bf16.mxu0 %v525
        %579 = vmatpush1.bf16.msra.mxu0 %v524
        %580 = vmatprep.subr.bf16.mxu0 %v523
        %581 = vmatpush1.bf16.msra.mxu0 %v522
        %582 = vmatprep.subr.bf16.mxu0 %v521
        %583 = vmatpush1.bf16.msra.mxu0 %v520
        %584 = vmatprep.subr.bf16.mxu0 %v519
        %585 = vmatpush1.bf16.msra.mxu0 %v518
        %586 = vmatprep.subr.bf16.mxu0 %v517
        %587 = vmatpush1.bf16.msra.mxu0 %v516
        %588 = vmatprep.subr.bf16.mxu0 %v515
        %589 = vmatpush1.bf16.msra.mxu0 %v514
        %590 = vmatprep.subr.bf16.mxu0 %v513
        %591 = vmatpush1.bf16.msra.mxu0 %v512
        %592 = vmatprep.subr.bf16.mxu0 %v543
        %593 = vmatpush2.bf16.msra.mxu0 %v542
        %594 = vmatprep.subr.bf16.mxu0 %v541
        %595 = vmatpush2.bf16.msra.mxu0 %v540
        %596 = vmatprep.subr.bf16.mxu0 %v539
        %597 = vmatpush2.bf16.msra.mxu0 %v538
        %598 = vmatprep.subr.bf16.mxu0 %v537
        %599 = vmatpush2.bf16.msra.mxu0 %v536
        %600 = vmatprep.subr.bf16.mxu0 %v535
        %601 = vmatpush2.bf16.msra.mxu0 %v534
        %602 = vmatprep.subr.bf16.mxu0 %v533
        %603 = vmatpush2.bf16.msra.mxu0 %v532
        %604 = vmatprep.subr.bf16.mxu0 %v531
        %605 = vmatpush2.bf16.msra.mxu0 %v530
        %606 = vmatprep.subr.bf16.mxu0 %v529
        %607 = vmatpush2.bf16.msra.mxu0 %v528
        %608 = vmatprep.mubr.bf16.mxu0 %v370
        %609 = vmatmul.mubr.bf16.gmra.mxu0 %v369
        %v610 = vpop.f32.mrf.mxu0
        %v611 = vadd.f32 %v409, %v610
        %v612 = vpop.f32.mrf.mxu0
        %v613 = vadd.f32 %v413, %v612
        %v614 = vpop.f32.mrf.mxu0
        %v615 = vadd.f32 %v409, %v614
        %v616 = vpop.f32.mrf.mxu0
        %v617 = vadd.f32 %v413, %v616
        %618 = vmatprep.mubr.bf16.mxu0 %v372
        %619 = vmatmul.mubr.bf16.gmra.mxu0 %v371
        %v620 = vpop.f32.mrf.mxu0
        %v621 = vadd.f32 %v409, %v620
        %v622 = vpop.f32.mrf.mxu0
        %v623 = vadd.f32 %v413, %v622
        %v624 = vpop.f32.mrf.mxu0
        %v625 = vadd.f32 %v409, %v624
        %v626 = vpop.f32.mrf.mxu0
        %v627 = vadd.f32 %v413, %v626
        %628 = vdwg.mxu0
        %v629 = vmax.f32 %v611, 0.0
        %v630 = vmax.f32 %v613, 0.0
        %v631 = vmax.f32 %v615, 0.0
        %v632 = vmax.f32 %v617, 0.0
        %v633 = vmax.f32 %v621, 0.0
        %v634 = vmax.f32 %v623, 0.0
        %v635 = vmax.f32 %v625, 0.0
        %v636 = vmax.f32 %v627, 0.0
        %v637 = vpack.c.bf16 %v631, %v629
        %v638 = vpack.c.bf16 %v632, %v630
        %v639 = vpack.c.bf16 %v635, %v633
        %v640 = vpack.c.bf16 %v636, %v634
        %v641 = vld [vmem:[#allocation5] sm:$0xf]
        %v642 = vld [vmem:[#allocation5 + $0x4] sm:$0xf]
        %v643 = vld [vmem:[#allocation5 + $0x8] sm:$0xf]
        %v644 = vld [vmem:[#allocation5 + $0xc] sm:$0xf]
        %v645 = vld [vmem:[#allocation5 + $0x10] sm:$0xf]
        %v646 = vld [vmem:[#allocation5 + $0x14] sm:$0xf]
        %v647 = vld [vmem:[#allocation5 + $0x18] sm:$0xf]
        %v648 = vld [vmem:[#allocation5 + $0x1c] sm:$0xf]
        %v649 = vld [vmem:[#allocation5 + $0x20] sm:$0xf]
        %v650 = vld [vmem:[#allocation5 + $0x24] sm:$0xf]
        %v651 = vld [vmem:[#allocation5 + $0x28] sm:$0xf]
        %v652 = vld [vmem:[#allocation5 + $0x2c] sm:$0xf]
        %v653 = vld [vmem:[#allocation5 + $0x30] sm:$0xf]
        %v654 = vld [vmem:[#allocation5 + $0x34] sm:$0xf]
        %v655 = vld [vmem:[#allocation5 + $0x38] sm:$0xf]
        %v656 = vld [vmem:[#allocation5 + $0x3c] sm:$0xf]
        %v657 = vld [vmem:[#allocation5 + $0x40] sm:$0xf]
        %v658 = vld [vmem:[#allocation5 + $0x44] sm:$0xf]
        %v659 = vld [vmem:[#allocation5 + $0x48] sm:$0xf]
        %v660 = vld [vmem:[#allocation5 + $0x4c] sm:$0xf]
        %v661 = vld [vmem:[#allocation5 + $0x50] sm:$0xf]
        %v662 = vld [vmem:[#allocation5 + $0x54] sm:$0xf]
        %v663 = vld [vmem:[#allocation5 + $0x58] sm:$0xf]
        %v664 = vld [vmem:[#allocation5 + $0x5c] sm:$0xf]
        %v665 = vld [vmem:[#allocation5 + $0x60] sm:$0xf]
        %v666 = vld [vmem:[#allocation5 + $0x64] sm:$0xf]
        %v667 = vld [vmem:[#allocation5 + $0x68] sm:$0xf]
        %v668 = vld [vmem:[#allocation5 + $0x6c] sm:$0xf]
        %v669 = vld [vmem:[#allocation5 + $0x70] sm:$0xf]
        %v670 = vld [vmem:[#allocation5 + $0x74] sm:$0xf]
        %v671 = vld [vmem:[#allocation5 + $0x78] sm:$0xf]
        %v672 = vld [vmem:[#allocation5 + $0x7c] sm:$0xf]
        %v674 = vlaneseq
        %v675 = vshrl.u32 %v674, 7
        %v676 = vsub.s32 0, %v675
        %v677 = vrot.slane %v259, %v676
        %v711 = vunpack.c.l.b16 %v641
        %v712 = vunpack.c.l.b16 %v642
        %v713 = vunpack.c.l.b16 %v643
        %v714 = vunpack.c.l.b16 %v644
        %v715 = vunpack.c.l.b16 %v645
        %v716 = vunpack.c.l.b16 %v646
        %v717 = vunpack.c.l.b16 %v647
        %v718 = vunpack.c.l.b16 %v648
        %v719 = vunpack.c.l.b16 %v649
        %v720 = vunpack.c.l.b16 %v650
        %v721 = vunpack.c.l.b16 %v651
        %v722 = vunpack.c.l.b16 %v652
        %v723 = vunpack.c.l.b16 %v653
        %v724 = vunpack.c.l.b16 %v654
        %v725 = vunpack.c.l.b16 %v655
        %v726 = vunpack.c.l.b16 %v656
        %v727 = vunpack.c.l.b16 %v657
        %v728 = vunpack.c.l.b16 %v658
        %v729 = vunpack.c.l.b16 %v659
        %v730 = vunpack.c.l.b16 %v660
        %v731 = vunpack.c.l.b16 %v661
        %v732 = vunpack.c.l.b16 %v662
        %v733 = vunpack.c.l.b16 %v663
        %v734 = vunpack.c.l.b16 %v664
        %v735 = vunpack.c.l.b16 %v665
        %v736 = vunpack.c.l.b16 %v666
        %v737 = vunpack.c.l.b16 %v667
        %v738 = vunpack.c.l.b16 %v668
        %v739 = vunpack.c.l.b16 %v669
        %v740 = vunpack.c.l.b16 %v670
        %v741 = vunpack.c.l.b16 %v671
        %v742 = vunpack.c.l.b16 %v672
        %v743 = vpack.c.b16 %v712, %v711
        %v744 = vpack.c.b16 %v714, %v713
        %v745 = vpack.c.b16 %v716, %v715
        %v746 = vpack.c.b16 %v718, %v717
        %v747 = vpack.c.b16 %v720, %v719
        %v748 = vpack.c.b16 %v722, %v721
        %v749 = vpack.c.b16 %v724, %v723
        %v750 = vpack.c.b16 %v726, %v725
        %v751 = vpack.c.b16 %v728, %v727
        %v752 = vpack.c.b16 %v730, %v729
        %v753 = vpack.c.b16 %v732, %v731
        %v754 = vpack.c.b16 %v734, %v733
        %v755 = vpack.c.b16 %v736, %v735
        %v756 = vpack.c.b16 %v738, %v737
        %v757 = vpack.c.b16 %v740, %v739
        %v758 = vpack.c.b16 %v742, %v741
        %775 = vmatprep.subr.bf16.mxu0 0
        %776 = vmatpush1.bf16.msra.mxu0 %v750
        %777 = vmatprep.subr.bf16.mxu0 0
        %778 = vmatpush1.bf16.msra.mxu0 %v749
        %779 = vmatprep.subr.bf16.mxu0 0
        %780 = vmatpush1.bf16.msra.mxu0 %v748
        %781 = vmatprep.subr.bf16.mxu0 0
        %782 = vmatpush1.bf16.msra.mxu0 %v747
        %783 = vmatprep.subr.bf16.mxu0 0
        %784 = vmatpush1.bf16.msra.mxu0 %v746
        %785 = vmatprep.subr.bf16.mxu0 0
        %786 = vmatpush1.bf16.msra.mxu0 %v745
        %787 = vmatprep.subr.bf16.mxu0 0
        %788 = vmatpush1.bf16.msra.mxu0 %v744
        %789 = vmatprep.subr.bf16.mxu0 0
        %790 = vmatpush1.bf16.msra.mxu0 %v743
        %791 = vmatprep.subr.bf16.mxu0 0
        %792 = vmatpush2.bf16.msra.mxu0 %v758
        %793 = vmatprep.subr.bf16.mxu0 0
        %794 = vmatpush2.bf16.msra.mxu0 %v757
        %795 = vmatprep.subr.bf16.mxu0 0
        %796 = vmatpush2.bf16.msra.mxu0 %v756
        %797 = vmatprep.subr.bf16.mxu0 0
        %798 = vmatpush2.bf16.msra.mxu0 %v755
        %799 = vmatprep.subr.bf16.mxu0 0
        %800 = vmatpush2.bf16.msra.mxu0 %v754
        %801 = vmatprep.subr.bf16.mxu0 0
        %802 = vmatpush2.bf16.msra.mxu0 %v753
        %803 = vmatprep.subr.bf16.mxu0 0
        %804 = vmatpush2.bf16.msra.mxu0 %v752
        %805 = vmatprep.subr.bf16.mxu0 0
        %806 = vmatpush2.bf16.msra.mxu0 %v751
        %807 = vmatprep.mubr.bf16.mxu0 %v638
        %808 = vmatmul.mubr.bf16.gmra.mxu0 %v637
        %v809 = vpop.f32.mrf.mxu0
        %v810 = vadd.f32 %v677, %v809
        %v811 = vpop.f32.mrf.mxu0
        %v812 = vpop.f32.mrf.mxu0
        %v813 = vadd.f32 %v677, %v812
        %v814 = vpop.f32.mrf.mxu0
        %815 = vmatprep.mubr.bf16.mxu0 %v640
        %816 = vmatmul.mubr.bf16.gmra.mxu0 %v639
        %v817 = vpop.f32.mrf.mxu0
        %v818 = vadd.f32 %v677, %v817
        %v819 = vpop.f32.mrf.mxu0
        %v820 = vpop.f32.mrf.mxu0
        %v821 = vadd.f32 %v677, %v820
        %v822 = vpop.f32.mrf.mxu0
        %823 = vdwg.mxu0
        %824 = vst [vmem:[%s248] sm:$0xff] %v810
        %825 = vst [vmem:[%s248 + $0x8] sm:$0xff] %v813
        %826 = vst [vmem:[%s248 + $0x10] sm:$0xff] %v818
        %827 = vst [vmem:[%s248 + $0x18] sm:$0xff] %v821
        %s828 = sand.u32 %s139, 1
        %s829 = scalar_lea.sflag [#allocation4], %s828
        %s830 = sand.u32 %s139, 1
        %s831 = smul.addr %s830, 32
        %s832 = scalar_lea.vmem [#allocation7], %s831
        // Predicated region
        $region49: #{tpu_custom_call.1} parent=39 // pred_check
          %p833 = pneg %p149
        $region50: #{tpu_custom_call.1} parent=39 // pred_check_branch
          %835 = sbr.rel (%p833) target = $region52
        $region51: #{tpu_custom_call.1} parent=39 // pred_region
          %s836 = smul.u32 4, %s21
          %s838 = ssub.s32 512, 512
          %839 = vsyncadd %s829, %s838
          %s840 = smul.addr %s836, 128
          %s841 = scalar_lea.hbm %s5, %s840
          %s842 = sshll.u32 %s832, 4
          %s843 = int_to_ptr.vmem [resolvable:$true] %s842
          %848 = dma.vmem_to_hbm [thread:$0]  %s843, 512, %s841, %s829, 128, 128, 8
        $region52: #{tpu_custom_call.1} parent=39 // pred_fallthru
          _
      $region40: #{tpu_custom_call.1} parent=5 // pred_fallthru
        _
      %p849 = scmp.le.s32.totalorder 2, %s16
      // Predicated region
      $region53: #{tpu_custom_call.1} parent=5 // pred_check
        %p850 = pneg %p849
      $region54: #{tpu_custom_call.1} parent=5 // pred_check_branch
        %852 = sbr.rel (%p850) target = $region56
      $region55: #{tpu_custom_call.1} parent=5 // pred_region
        %s853 = ssub.s32 %s16, 2
        // Predicated region
        $region57: #{tpu_custom_call.1} parent=55 // pred_check
          %p854 = pneg %p155
        $region58: #{tpu_custom_call.1} parent=55 // pred_check_branch
          %856 = sbr.rel (%p854) target = $region60
        $region59: #{tpu_custom_call.1} parent=55 // pred_region
          %s857 = sand.u32 %s140, 1
          %s858 = scalar_lea.sflag [#allocation4], %s857
          %s859 = sand.u32 %s140, 1
          %s860 = smul.addr %s859, 32
          %s861 = scalar_lea.vmem [#allocation7], %s860
          %862 = dma.done %s858, 512
        $region60: #{tpu_custom_call.1} parent=55 // pred_fallthru
          _
      $region56: #{tpu_custom_call.1} parent=5 // pred_fallthru
        _
    $region6: #{tpu_custom_call.1} parent=1 // loop_footer
      %s20 = sadd.s32 1, %s16
    $region7: #{tpu_custom_call.1} parent=1 // loop_footer_branch
      %15 = sbr.rel target = $region3
    $region8: #{tpu_custom_call.1} parent=1 // loop_exit
      _
    %863 = vsyncpa [#allocation3], 1
    %s864 = scalar_lea.sflag [#allocation3], 1
    %865 = vsyncpa %s864, 1
    %866 = vsyncpa [#allocation6], 1
    %867 = vsyncpa [#allocation4], 1
    %s868 = scalar_lea.sflag [#allocation4], 1
    %869 = vsyncpa %s868, 1

</llo_original>
